<compile_context>
chip_gen: v6e
topology: v6e:2x2x1
jax: 0.10.0
libtpu: 0.0.40
codegen_flags: <defaults>
</compile_context>

<pallas_src>
import functools

import jax
import jax.numpy as jnp
from jax.experimental import pallas as pl
from jax.experimental.pallas import tpu as pltpu


def _matmul_single_k_kernel(g_ref, x_ref, o_ref):
    # tk covers all of M: one MXU matmul, direct store, no scratch/predicates.
    o_ref[...] = jnp.dot(
        g_ref[...], x_ref[...], preferred_element_type=jnp.float32
    )


def _matmul_multi_k_kernel(g_ref, x_ref, o_ref):
    # Output block index is independent of k -> o_ref (f32) stays resident in
    # VMEM across the K axis; accumulate into it directly (no scratch).
    @pl.when(pl.program_id(2) == 0)
    def _():
        o_ref[...] = jnp.zeros_like(o_ref)

    o_ref[...] += jnp.dot(
        g_ref[...], x_ref[...], preferred_element_type=jnp.float32
    )


def _round_up(v, m):
    return ((v + m - 1) // m) * m


def _cdiv(a, b):
    return -(-a // b)


@functools.partial(jax.jit, static_argnames=("tm", "tn", "tk"))
def _dense_matmul(graph_bf, x_bf, *, tm, tn, tk):
    """Tiled MXU matmul: bf16 inputs, f32 accumulation, f32 output.

    Shapes must already be padded to exact multiples of (tm, tk) / (tk, tn).
    """
    N, M = graph_bf.shape
    M2, D = x_bf.shape
    assert M == M2
    assert N % tm == 0 and D % tn == 0 and M % tk == 0

    k_steps = M // tk
    kernel = _matmul_single_k_kernel if k_steps == 1 else _matmul_multi_k_kernel

    cost = pl.CostEstimate(
        flops=2 * N * M * D,
        transcendentals=0,
        bytes_accessed=(
            N * M * graph_bf.dtype.itemsize
            + M * D * x_bf.dtype.itemsize
            + N * D * 4
        ),
    )

    # Double-buffered tile footprint (graph + x in bf16, out in f32).  Raise
    # the scoped VMEM limit only when the default (16 MiB on v5e) could be
    # exceeded; 48 MiB stays below v7x's 64 MiB physical VMEM.
    tile_bytes = 2 * 2 * (tm * tk + tk * tn) + 2 * 4 * (tm * tn)
    vmem_limit = 48 * 1024 * 1024 if tile_bytes > 12 * 1024 * 1024 else None

    return pl.pallas_call(
        kernel,
        out_shape=jax.ShapeDtypeStruct((N, D), jnp.float32),
        grid_spec=pltpu.PrefetchScalarGridSpec(
            num_scalar_prefetch=0,
            grid=(N // tm, D // tn, k_steps),
            in_specs=[
                pl.BlockSpec((tm, tk), lambda i, j, k: (i, k)),
                pl.BlockSpec((tk, tn), lambda i, j, k: (k, j)),
            ],
            out_specs=pl.BlockSpec((tm, tn), lambda i, j, k: (i, j)),
        ),
        compiler_params=pltpu.CompilerParams(
            dimension_semantics=("parallel", "parallel", "arbitrary"),
            vmem_limit_bytes=vmem_limit,
        ),
        cost_estimate=cost,
    )(graph_bf, x_bf)


def _choose_tile(dim, max_tile, prefer256=False):
    """Pick (tile, padded_dim) covering `dim` with bounded padding.

    If the 128-aligned dim fits under `max_tile`, one block covers it exactly.
    Otherwise split into ceil(dim/max_tile) blocks of a 128-aligned tile, so
    padding is at most one quantum per block (no pad-to-tile blow-up).  When
    `prefer256`, snap the tile to a 256-multiple (v6e/v7x 256x256 MXU) if that
    costs <= ~6% extra padding.
    """
    d_al = _round_up(dim, 128)
    if d_al <= max_tile:
        return d_al, d_al
    nblk = _cdiv(d_al, max_tile)
    tile = _round_up(_cdiv(d_al, nblk), 128)
    if prefer256:
        tile256 = _round_up(_cdiv(d_al, nblk), 256)
        if tile256 * nblk <= d_al + max(d_al // 16, 256):
            tile = tile256
    return tile, tile * nblk


def _pick_tiles(N, M, D):
    """Tile sizes and padded problem dims.

    Preferences: bound padding of every dim; cover M (reduction) and D (lane)
    with a single block when they fit so x is resident in VMEM and the
    dominant N x M graph stream is read from HBM exactly once; 256-multiple
    tn/tk when nearly free; >=2 blocks on the parallel grid axes for v7x's
    two TensorCores.  Caps (tm<=1024, tn<=1024, tk<=2048) bound the
    double-buffered footprint to <= 24 MiB (v7x-safe).
    """
    tm, n_pad = _choose_tile(N, 1024, prefer256=False)
    tn, d_pad = _choose_tile(D, 1024, prefer256=True)
    tk, m_pad = _choose_tile(M, 2048, prefer256=True)

    # Guarantee >=2 blocks across the parallel (i, j) axes whenever possible.
    # Split the i axis only: splitting j would re-read the graph (the
    # dominant HBM stream) once per extra j block.
    if (n_pad // tm) * (d_pad // tn) < 2 and n_pad > 128:
        tm = _round_up(_cdiv(_round_up(N, 128), 2), 128)
        n_pad = 2 * tm

    return (tm, tn, tk), (n_pad, m_pad, d_pad)


def simple_hypergraph_conv(indices, values, graph_shape, x, edge_dropout=0.0,
                           dropout_key=None, training=False):
    """Replicates SimpleHypergraphConv.forward.

    indices: int32 [2, nnz]  (row, col) of the sparse COO graph
    values:  float32 [nnz]
    graph_shape: (N, M)
    x: float32 [M, D]
    returns: float32 [N, D]

    Note: the matmul runs with bf16 inputs and f32 accumulation; users needing
    fp32-exact SpMM should densify in f32 and use an f32 matmul instead.
    """
    N, M = graph_shape
    M2, D = x.shape
    assert M == M2

    # Edge dropout on the sparse values (identity for p=0.0 / eval mode).
    if training and edge_dropout > 0.0:
        if dropout_key is None:
            raise ValueError(
                "training=True with edge_dropout > 0 requires dropout_key")
        keep = jax.random.bernoulli(dropout_key, 1.0 - edge_dropout,
                                    values.shape)
        values = jnp.where(keep, values / (1.0 - edge_dropout), 0.0)

    (tm, tn, tk), (n_pad, m_pad, d_pad) = _pick_tiles(N, M, D)

    # Glue: densify the COO graph at the padded shape.  Duplicate (row, col)
    # entries are coalesced by summing in f32 (torch sparse-COO semantics),
    # then the result is cast to bf16 once.  Padding is zeros, so the K tail
    # contributes exactly zero and every output store is a full tile.
    # TODO(synk): fused SpMM (scalar-prefetched CSR offsets + in-kernel
    # scatter into per-(i,k) VMEM tiles) to avoid the N x M densification.
    graph_dense = (
        jnp.zeros((n_pad, m_pad), jnp.float32)
        .at[indices[0], indices[1]]
        .add(values.astype(jnp.float32))
        .astype(jnp.bfloat16)
    )

    x_bf = x.astype(jnp.bfloat16)
    if (m_pad, d_pad) != (M, D):
        x_bf = jnp.pad(x_bf, ((0, m_pad - M), (0, d_pad - D)))

    out = _dense_matmul(graph_dense, x_bf, tm=tm, tn=tn, tk=tk)
    return out[:N, :D].astype(x.dtype)


if __name__ == "__main__":
    key = jax.random.PRNGKey(0)
    k_idx_r, k_idx_c, k_val, k_x = jax.random.split(key, 4)

    N, M, D = 256, 256, 128  # nodes x hyperedges, feature dim
    nnz = 1024

    rows = jax.random.randint(k_idx_r, (nnz,), 0, N, dtype=jnp.int32)
    cols = jax.random.randint(k_idx_c, (nnz,), 0, M, dtype=jnp.int32)
    indices = jnp.stack([rows, cols], axis=0)
    values = jax.random.uniform(k_val, (nnz,), dtype=jnp.float32)
    x = jax.random.normal(k_x, (M, D), dtype=jnp.float32)

    out = jax.block_until_ready(
        simple_hypergraph_conv(indices, values, (N, M), x, edge_dropout=0.0))
    assert out.shape == (N, D)

    # References.  Duplicates coalesced in f32 then cast to bf16 (as the
    # kernel does); f32 accumulation in both kernel and reference.
    graph_f32 = jnp.zeros((N, M), jnp.float32).at[rows, cols].add(values)
    graph_bf = graph_f32.astype(jnp.bfloat16)
    ref_bf16 = jnp.dot(
        graph_bf.astype(jnp.float32),
        x.astype(jnp.bfloat16).astype(jnp.float32),
    )
    ref_f32 = graph_f32 @ x
    assert jnp.allclose(out, ref_bf16, atol=1e-3, rtol=1e-3)
    assert jnp.allclose(out, ref_f32, atol=5e-2, rtol=5e-2)

    # Also exercise the multi-K-step accumulation path (small explicit tiles).
    out2 = jax.block_until_ready(
        _dense_matmul(graph_bf, x.astype(jnp.bfloat16), tm=128, tn=128, tk=128))
    assert jnp.allclose(out2, ref_bf16, atol=1e-3, rtol=1e-3)

    # Exercise a non-tile-aligned shape (padding + tile-selection paths).
    N2, M2, D2 = 200, 300, 96
    nnz2 = 512
    rows2 = jax.random.randint(k_idx_r, (nnz2,), 0, N2, dtype=jnp.int32)
    cols2 = jax.random.randint(k_idx_c, (nnz2,), 0, M2, dtype=jnp.int32)
    vals2 = jax.random.uniform(k_val, (nnz2,), dtype=jnp.float32)
    x2 = jax.random.normal(k_x, (M2, D2), dtype=jnp.float32)
    out3 = jax.block_until_ready(
        simple_hypergraph_conv(jnp.stack([rows2, cols2], axis=0), vals2,
                               (N2, M2), x2))
    g2 = jnp.zeros((N2, M2), jnp.float32).at[rows2, cols2].add(vals2)
    ref3 = g2 @ x2
    assert out3.shape == (N2, D2)
    assert jnp.allclose(out3, ref3, atol=5e-2, rtol=5e-2)

    print("KERNEL_OK")
</pallas_src>

<mosaic_0001>
module attributes {stable_mosaic.version = 11 : i64} {
  func.func @_matmul_single_k_kernel(%arg0: i32, %arg1: i32, %arg2: i32, %arg3: memref<128x256xbf16, #tpu.memory_space<vmem>>, %arg4: memref<256x128xbf16, #tpu.memory_space<vmem>>, %arg5: memref<128x128xf32, #tpu.memory_space<vmem>>) attributes {dimension_semantics = [#tpu.dimension_semantics<parallel>, #tpu.dimension_semantics<parallel>, #tpu.dimension_semantics<arbitrary>], iteration_bounds = array<i64: 2, 1, 1>, scalar_prefetch = 0 : i64, scratch_operands = 0 : i64, tpu.core_type = #tpu.core_type<tc>, window_params = [{transform_indices = @transform_0, window_bounds = array<i64: 128, 256>}, {transform_indices = @transform_1, window_bounds = array<i64: 256, 128>}, {transform_indices = @transform_2, window_bounds = array<i64: 128, 128>}]} {
    %c0 = arith.constant 0 : index
    %c0_0 = arith.constant 0 : index
    %0 = vector.load %arg3[%c0, %c0_0] : memref<128x256xbf16, #tpu.memory_space<vmem>>, vector<128x256xbf16>
    %c0_1 = arith.constant 0 : index
    %c0_2 = arith.constant 0 : index
    %1 = vector.load %arg4[%c0_1, %c0_2] : memref<256x128xbf16, #tpu.memory_space<vmem>>, vector<256x128xbf16>
    %cst = arith.constant dense<0.000000e+00> : vector<128x128xf32>
    %2 = tpu.matmul %0, %1, %cst {dimension_numbers = #tpu.dot_dimension_numbers<[1], [0], [0], [1], [0, 0, 1, 1], [], []>} : vector<128x256xbf16>, vector<256x128xbf16>, vector<128x128xf32> -> vector<128x128xf32>
    %c0_3 = arith.constant 0 : index
    %c0_4 = arith.constant 0 : index
    %3 = vector.load %arg5[%c0_3, %c0_4] : memref<128x128xf32, #tpu.memory_space<vmem>>, vector<128x128xf32>
    tpu.vector_store %arg5[%c0_3, %c0_4], %2 {strides = array<i32>} : memref<128x128xf32, #tpu.memory_space<vmem>>, vector<128x128xf32>,
    return
  }
  func.func @transform_0(%arg0: i32, %arg1: i32, %arg2: i32) -> (i32, i32) {
    %c0_i32 = arith.constant 0 : i32
    return %arg0, %arg2 : i32, i32
  }
  func.func @transform_1(%arg0: i32, %arg1: i32, %arg2: i32) -> (i32, i32) {
    %c0_i32 = arith.constant 0 : i32
    return %arg2, %arg1 : i32, i32
  }
  func.func @transform_2(%arg0: i32, %arg1: i32, %arg2: i32) -> (i32, i32) {
    %c0_i32 = arith.constant 0 : i32
    return %arg0, %arg1 : i32, i32
  }
}

</mosaic_0001>

<llo_original>
// kernel: _dense_matmul.1
$region0: #{_dense_matmul.1}
  #allocation0 [shape = 'u32[]', space=smem, size = 0x4, offset = 0x4, fixed_abs, tag = 'smem constant byte address 0x4 - core index']
  #allocation1 [shape = 'u32[144,128]{1,0:T(1,128)}', space=vmem, size = 0x12000, scoped, tag = 'internal scratch']
  %s0 = inlined_call_operand.hbm [shape: bf16[256,256], index: 0, kind: input, shape index: {}]
  %s1 = inlined_call_operand.hbm [shape: bf16[256,128], index: 1, kind: input, shape index: {}]
  %s2 = inlined_call_operand.hbm [shape: f32[256,128], index: 2, kind: output, shape index: {}]
  %s3 = sld [smem:[#allocation0]]
  $region49: #{_dense_matmul.1} parent=0
    _
  %s5 = ssub.s32 1, %s3
  %s6 = scalar_select 0, %s5, %s3
  $region1: #{_dense_matmul.1} parent=0
    #allocation2 [shape = 'u8[131072]{0}', space=vmem, size = 0x20000, scoped, tag = 'input window, operand 0']
    #allocation3 [shape = 's32[2]{0}', space=sflag, size = 0x8, scoped, tag = 'scoped memory for _dense_matmul.1']
    #allocation4 [shape = 's32[2]{0}', space=sflag, size = 0x8, scoped, tag = 'scoped memory for _dense_matmul.1']
    #allocation5 [shape = 'u8[65536]{0}', space=vmem, size = 0x10000, scoped, tag = 'input window, operand 1, single buffered']
    #allocation6 [shape = 's32[1]{0}', space=sflag, size = 0x4, scoped, tag = 'scoped memory for _dense_matmul.1']
    #allocation7 [shape = 'u8[131072]{0}', space=vmem, size = 0x20000, scoped, tag = 'output window, operand 0']
    %7 = vsyncpa [#allocation3], 0
    %s8 = scalar_lea.sflag [#allocation3], 1
    %9 = vsyncpa %s8, 0
    %10 = vsyncpa [#allocation6], 0
    %11 = vsyncpa [#allocation4], 0
    %s12 = scalar_lea.sflag [#allocation4], 1
    %13 = vsyncpa %s12, 0
    loop: start=0, step=1, limit=4
    $region2: #{_dense_matmul.1} parent=1 // loop_pre_header
      _
    $region3: #{_dense_matmul.1} parent=1 // loop_header
      %s15 = sphi 0, %s19
      %p16 = scmp.ge.s32.totalorder %s15, 4
      %s22 = sphi 0, %s41
      %s23 = sphi 0, %s37
      %s24 = sphi 0, %s33
      %s25 = sphi 0, %s22
      %s26 = sphi 0, %s23
      %s27 = sphi 0, %s24
      %s28 = sphi 0, %s25
      %s29 = sphi 0, %s26
      %s30 = sphi 0, %s27
      %s46 = sphi 0, %s48
      %s49 = sphi 0, %s46
      %s50 = sphi 0, %s49
      %s66 = sphi 0, %s50
      %s74 = sphi 0, %s76
      %s77 = sphi 0, %s74
      %s78 = sphi 0, %s77
      %s94 = sphi 0, %s78
      %s102 = sphi 0, %s104
      %s105 = sphi 0, %s102
      %s106 = sphi 0, %s105
      %s122 = sphi 0, %s106
    $region4: #{_dense_matmul.1} parent=1 // loop_header_branch
      %18 = sbr.rel (%p16) target = $region8
    $region5: #{_dense_matmul.1} parent=1 // loop_body
      %s20 = ssub.s32 %s15, 1
      %s21 = ssub.s32 %s15, 2
      %s31 = sadd.s32 1, %s24
      %p32 = scmp.ge.s32.totalorder %s31, 1
      %s33 = scalar_select %p32, 0, %s31
      %s34 = sadd.s32 1, %s23
      %s35 = scalar_select %p32, %s34, %s23
      %p36 = scmp.ge.s32.totalorder %s35, 1
      %s37 = scalar_select %p36, 0, %s35
      %s38 = sadd.s32 1, %s22
      %s39 = scalar_select %p36, %s38, %s22
      %p40 = scmp.ge.s32.totalorder %s39, 2
      %s41 = scalar_select %p40, 0, %s39
      %s42 = ssub.s32 %s22, %s41
      %s43 = ssub.s32 %s24, %s33
      %s44 = sor.u32 %s42, %s43
      %p45 = scmp.eq.s32.totalorder %s44, 0
      %s47 = sadd.s32 %s46, 1
      %s48 = scalar_select %p45, %s46, %s47
      %p51 = pneg %p45
      %p52 = scmp.eq.s32.totalorder %s15, 1
      %p53 = por %p51, %p52
      %p54 = scmp.ne.s32.totalorder %s46, %s49
      %p55 = scmp.eq.s32.totalorder %s15, 0
      %p56 = por %p54, %p55
      %p57 = scmp.ne.s32.totalorder %s46, %s49
      %p58 = scmp.eq.s32.totalorder %s20, 1
      %p59 = por %p57, %p58
      %p60 = scmp.ne.s32.totalorder %s49, %s50
      %p61 = scmp.eq.s32.totalorder %s20, 0
      %p62 = por %p60, %p61
      %p63 = scmp.ne.s32.totalorder %s49, %s50
      %p64 = scmp.eq.s32.totalorder %s21, 1
      %p65 = por %p63, %p64
      %p67 = scmp.ne.s32.totalorder %s50, %s66
      %p68 = scmp.eq.s32.totalorder %s21, 0
      %p69 = por %p67, %p68
      %s70 = ssub.s32 %s24, %s33
      %s71 = ssub.s32 %s23, %s37
      %s72 = sor.u32 %s70, %s71
      %p73 = scmp.eq.s32.totalorder %s72, 0
      %s75 = sadd.s32 %s74, 1
      %s76 = scalar_select %p73, %s74, %s75
      %p79 = pneg %p73
      %p80 = scmp.eq.s32.totalorder %s15, 1
      %p81 = por %p79, %p80
      %p82 = scmp.ne.s32.totalorder %s74, %s77
      %p83 = scmp.eq.s32.totalorder %s15, 0
      %p84 = por %p82, %p83
      %p85 = scmp.ne.s32.totalorder %s74, %s77
      %p86 = scmp.eq.s32.totalorder %s20, 1
      %p87 = por %p85, %p86
      %p88 = scmp.ne.s32.totalorder %s77, %s78
      %p89 = scmp.eq.s32.totalorder %s20, 0
      %p90 = por %p88, %p89
      %p91 = scmp.ne.s32.totalorder %s77, %s78
      %p92 = scmp.eq.s32.totalorder %s21, 1
      %p93 = por %p91, %p92
      %p95 = scmp.ne.s32.totalorder %s78, %s94
      %p96 = scmp.eq.s32.totalorder %s21, 0
      %p97 = por %p95, %p96
      %s98 = ssub.s32 %s22, %s41
      %s99 = ssub.s32 %s23, %s37
      %s100 = sor.u32 %s98, %s99
      %p101 = scmp.eq.s32.totalorder %s100, 0
      %s103 = sadd.s32 %s102, 1
      %s104 = scalar_select %p101, %s102, %s103
      %p107 = pneg %p101
      %p108 = scmp.eq.s32.totalorder %s15, 1
      %p109 = por %p107, %p108
      %p110 = scmp.ne.s32.totalorder %s102, %s105
      %p111 = scmp.eq.s32.totalorder %s15, 0
      %p112 = por %p110, %p111
      %p113 = scmp.ne.s32.totalorder %s102, %s105
      %p114 = scmp.eq.s32.totalorder %s20, 1
      %p115 = por %p113, %p114
      %p116 = scmp.ne.s32.totalorder %s105, %s106
      %p117 = scmp.eq.s32.totalorder %s20, 0
      %p118 = por %p116, %p117
      %p119 = scmp.ne.s32.totalorder %s105, %s106
      %p120 = scmp.eq.s32.totalorder %s21, 1
      %p121 = por %p119, %p120
      %p123 = scmp.ne.s32.totalorder %s106, %s122
      %p124 = scmp.eq.s32.totalorder %s21, 0
      %p125 = por %p123, %p124
      %p126 = scmp.le.s32.totalorder 1, %s15
      %p127 = scmp.lt.s32.totalorder %s15, 3
      %p128 = pnand %p126, %p127
      %p129 = pneg %p128
      // Predicated region
      $region9: #{_dense_matmul.1} parent=5 // pred_check
        _
      $region10: #{_dense_matmul.1} parent=5 // pred_check_branch
        %131 = sbr.rel (%p128) target = $region12
      $region11: #{_dense_matmul.1} parent=5 // pred_region
        %s132 = ssub.s32 %s15, 1
        // Predicated region
        $region13: #{_dense_matmul.1} parent=11 // pred_check
          %p133 = pneg %p90
        $region14: #{_dense_matmul.1} parent=11 // pred_check_branch
          %135 = sbr.rel (%p133) target = $region16
        $region15: #{_dense_matmul.1} parent=11 // pred_region
          %s136 = smul.u32 32, %s27
          %s138 = ssub.s32 2048, 2048
          %139 = vsyncadd [#allocation6], %s138
          %s140 = sadd.s32 %s26, %s136
          %s141 = smul.addr %s140, 64
          %s142 = scalar_lea.hbm %s1, %s141
          %s143 = sshll.u32 [#allocation5], 4
          %s144 = int_to_ptr.vmem [resolvable:$true] %s143
          %149 = dma.hbm_to_vmem [thread:$0]  %s142, 2048, %s144, [#allocation6], 64, 64, 4
        $region16: #{_dense_matmul.1} parent=11 // pred_fallthru
          _
      $region12: #{_dense_matmul.1} parent=5 // pred_fallthru
        _
      %p150 = scmp.lt.s32.totalorder %s15, 2
      // Predicated region
      $region17: #{_dense_matmul.1} parent=5 // pred_check
        %p151 = pneg %p150
      $region18: #{_dense_matmul.1} parent=5 // pred_check_branch
        %153 = sbr.rel (%p151) target = $region20
      $region19: #{_dense_matmul.1} parent=5 // pred_region
        // Predicated region
        $region21: #{_dense_matmul.1} parent=19 // pred_check
          %p154 = pneg %p56
        $region22: #{_dense_matmul.1} parent=19 // pred_check_branch
          %156 = sbr.rel (%p154) target = $region24
        $region23: #{_dense_matmul.1} parent=19 // pred_region
          %s157 = sand.u32 %s46, 1
          %s158 = scalar_lea.sflag [#allocation3], %s157
          %s159 = sand.u32 %s46, 1
          %s160 = smul.addr %s159, 128
          %s161 = scalar_lea.vmem [#allocation2], %s160
          %s162 = smul.u32 16, %s22
          %s163 = smul.u32 2, %s24
          %s165 = ssub.s32 2048, 2048
          %166 = vsyncadd %s158, %s165
          %s167 = smul.addr %s162, 2
          %s168 = sadd.s32 %s163, %s167
          %s169 = smul.addr %s168, 64
          %s170 = scalar_lea.hbm %s0, %s169
          %s171 = sshll.u32 %s161, 4
          %s172 = int_to_ptr.vmem [resolvable:$true] %s171
          %177 = dma.hbm_to_vmem [thread:$0]  %s170, 2048, %s172, %s158, 128, 128, 8
        $region24: #{_dense_matmul.1} parent=19 // pred_fallthru
          _
      $region20: #{_dense_matmul.1} parent=5 // pred_fallthru
        _
      %p178 = scmp.le.s32.totalorder 1, %s15
      %p179 = scmp.lt.s32.totalorder %s15, 3
      %p180 = pnand %p178, %p179
      %p181 = pneg %p180
      // Predicated region
      $region25: #{_dense_matmul.1} parent=5 // pred_check
        _
      $region26: #{_dense_matmul.1} parent=5 // pred_check_branch
        %183 = sbr.rel (%p180) target = $region28
      $region27: #{_dense_matmul.1} parent=5 // pred_region
        %s184 = ssub.s32 %s15, 1
        %s185 = sand.u32 %s49, 1
        %s186 = scalar_lea.sflag [#allocation3], %s185
        %s187 = sand.u32 %s49, 1
        %s188 = smul.addr %s187, 128
        %s189 = scalar_lea.vmem [#allocation2], %s188
        // Predicated region
        $region29: #{_dense_matmul.1} parent=27 // pred_check
          %p190 = pneg %p62
        $region30: #{_dense_matmul.1} parent=27 // pred_check_branch
          %192 = sbr.rel (%p190) target = $region32
        $region31: #{_dense_matmul.1} parent=27 // pred_region
          %193 = dma.done %s186, 2048
        $region32: #{_dense_matmul.1} parent=27 // pred_fallthru
          _
        // Predicated region
        $region33: #{_dense_matmul.1} parent=27 // pred_check
          %p194 = pneg %p90
        $region34: #{_dense_matmul.1} parent=27 // pred_check_branch
          %196 = sbr.rel (%p194) target = $region36
        $region35: #{_dense_matmul.1} parent=27 // pred_region
          %197 = dma.done [#allocation6], 2048
        $region36: #{_dense_matmul.1} parent=27 // pred_fallthru
          _
        %s198 = sand.u32 %s49, 1
        %s199 = scalar_lea.sflag [#allocation3], %s198
        %s200 = sand.u32 %s49, 1
        %s201 = smul.addr %s200, 128
        %s202 = scalar_lea.vmem [#allocation2], %s201
        %p203 = pneg %p62
        %p204 = pneg %p59
        %p205 = pneg %p90
        %p206 = pneg %p87
        %p207 = pneg %p118
        %p208 = pneg %p115
        %s209 = sand.u32 %s105, 1
        %s210 = scalar_lea.sflag [#allocation4], %s209
        %s211 = sand.u32 %s105, 1
        %s212 = smul.addr %s211, 128
        %s213 = scalar_lea.vmem [#allocation7], %s212
        %s214 = smul.u32 16, %s25
        %s215 = smul.u32 2, %s27
        %s216 = smul.u32 32, %s27
        %s217 = smul.u32 16, %s25
        %v219 = vld [vmem:[%s189] sm:$0xff]
        %v220 = vld [vmem:[%s189 + $0x8] sm:$0xff]
        %v221 = vld [vmem:[%s189 + $0x10] sm:$0xff]
        %v222 = vld [vmem:[%s189 + $0x18] sm:$0xff]
        %v223 = vld [vmem:[%s189 + $0x20] sm:$0xff]
        %v224 = vld [vmem:[%s189 + $0x28] sm:$0xff]
        %v225 = vld [vmem:[%s189 + $0x30] sm:$0xff]
        %v226 = vld [vmem:[%s189 + $0x38] sm:$0xff]
        %v227 = vld [vmem:[%s189 + $0x40] sm:$0xff]
        %v228 = vld [vmem:[%s189 + $0x48] sm:$0xff]
        %v229 = vld [vmem:[%s189 + $0x50] sm:$0xff]
        %v230 = vld [vmem:[%s189 + $0x58] sm:$0xff]
        %v231 = vld [vmem:[%s189 + $0x60] sm:$0xff]
        %v232 = vld [vmem:[%s189 + $0x68] sm:$0xff]
        %v233 = vld [vmem:[%s189 + $0x70] sm:$0xff]
        %v234 = vld [vmem:[%s189 + $0x78] sm:$0xff]
        %v235 = vld [vmem:[#allocation5] sm:$0xf]
        %v236 = vld [vmem:[#allocation5 + $0x4] sm:$0xf]
        %v237 = vld [vmem:[#allocation5 + $0x8] sm:$0xf]
        %v238 = vld [vmem:[#allocation5 + $0xc] sm:$0xf]
        %v239 = vld [vmem:[#allocation5 + $0x10] sm:$0xf]
        %v240 = vld [vmem:[#allocation5 + $0x14] sm:$0xf]
        %v241 = vld [vmem:[#allocation5 + $0x18] sm:$0xf]
        %v242 = vld [vmem:[#allocation5 + $0x1c] sm:$0xf]
        %v243 = vld [vmem:[#allocation5 + $0x20] sm:$0xf]
        %v244 = vld [vmem:[#allocation5 + $0x24] sm:$0xf]
        %v245 = vld [vmem:[#allocation5 + $0x28] sm:$0xf]
        %v246 = vld [vmem:[#allocation5 + $0x2c] sm:$0xf]
        %v247 = vld [vmem:[#allocation5 + $0x30] sm:$0xf]
        %v248 = vld [vmem:[#allocation5 + $0x34] sm:$0xf]
        %v249 = vld [vmem:[#allocation5 + $0x38] sm:$0xf]
        %v250 = vld [vmem:[#allocation5 + $0x3c] sm:$0xf]
        %v251 = vld [vmem:[#allocation5 + $0x40] sm:$0xf]
        %v252 = vld [vmem:[#allocation5 + $0x44] sm:$0xf]
        %v253 = vld [vmem:[#allocation5 + $0x48] sm:$0xf]
        %v254 = vld [vmem:[#allocation5 + $0x4c] sm:$0xf]
        %v255 = vld [vmem:[#allocation5 + $0x50] sm:$0xf]
        %v256 = vld [vmem:[#allocation5 + $0x54] sm:$0xf]
        %v257 = vld [vmem:[#allocation5 + $0x58] sm:$0xf]
        %v258 = vld [vmem:[#allocation5 + $0x5c] sm:$0xf]
        %v259 = vld [vmem:[#allocation5 + $0x60] sm:$0xf]
        %v260 = vld [vmem:[#allocation5 + $0x64] sm:$0xf]
        %v261 = vld [vmem:[#allocation5 + $0x68] sm:$0xf]
        %v262 = vld [vmem:[#allocation5 + $0x6c] sm:$0xf]
        %v263 = vld [vmem:[#allocation5 + $0x70] sm:$0xf]
        %v264 = vld [vmem:[#allocation5 + $0x74] sm:$0xf]
        %v265 = vld [vmem:[#allocation5 + $0x78] sm:$0xf]
        %v266 = vld [vmem:[#allocation5 + $0x7c] sm:$0xf]
        %v283 = vunpack.c.l.b16 %v219
        %v284 = vunpack.c.h.b16 %v219
        %v285 = vunpack.c.l.b16 %v220
        %v286 = vunpack.c.h.b16 %v220
        %v287 = vunpack.c.l.b16 %v221
        %v288 = vunpack.c.h.b16 %v221
        %v289 = vunpack.c.l.b16 %v222
        %v290 = vunpack.c.h.b16 %v222
        %v291 = vunpack.c.l.b16 %v223
        %v292 = vunpack.c.h.b16 %v223
        %v293 = vunpack.c.l.b16 %v224
        %v294 = vunpack.c.h.b16 %v224
        %v295 = vunpack.c.l.b16 %v225
        %v296 = vunpack.c.h.b16 %v225
        %v297 = vunpack.c.l.b16 %v226
        %v298 = vunpack.c.h.b16 %v226
        %v299 = vunpack.c.l.b16 %v227
        %v300 = vunpack.c.h.b16 %v227
        %v301 = vunpack.c.l.b16 %v228
        %v302 = vunpack.c.h.b16 %v228
        %v303 = vunpack.c.l.b16 %v229
        %v304 = vunpack.c.h.b16 %v229
        %v305 = vunpack.c.l.b16 %v230
        %v306 = vunpack.c.h.b16 %v230
        %v307 = vunpack.c.l.b16 %v231
        %v308 = vunpack.c.h.b16 %v231
        %v309 = vunpack.c.l.b16 %v232
        %v310 = vunpack.c.h.b16 %v232
        %v311 = vunpack.c.l.b16 %v233
        %v312 = vunpack.c.h.b16 %v233
        %v313 = vunpack.c.l.b16 %v234
        %v314 = vunpack.c.h.b16 %v234
        %v315 = vpack.c.b16 %v285, %v283
        %v316 = vpack.c.b16 %v286, %v284
        %v317 = vpack.c.b16 %v289, %v287
        %v318 = vpack.c.b16 %v290, %v288
        %v319 = vpack.c.b16 %v293, %v291
        %v320 = vpack.c.b16 %v294, %v292
        %v321 = vpack.c.b16 %v297, %v295
        %v322 = vpack.c.b16 %v298, %v296
        %v323 = vpack.c.b16 %v301, %v299
        %v324 = vpack.c.b16 %v302, %v300
        %v325 = vpack.c.b16 %v305, %v303
        %v326 = vpack.c.b16 %v306, %v304
        %v327 = vpack.c.b16 %v309, %v307
        %v328 = vpack.c.b16 %v310, %v308
        %v329 = vpack.c.b16 %v313, %v311
        %v330 = vpack.c.b16 %v314, %v312
        %v379 = vunpack.c.l.b16 %v235
        %v380 = vunpack.c.l.b16 %v236
        %v381 = vunpack.c.l.b16 %v237
        %v382 = vunpack.c.l.b16 %v238
        %v383 = vunpack.c.l.b16 %v239
        %v384 = vunpack.c.l.b16 %v240
        %v385 = vunpack.c.l.b16 %v241
        %v386 = vunpack.c.l.b16 %v242
        %v387 = vunpack.c.l.b16 %v243
        %v388 = vunpack.c.l.b16 %v244
        %v389 = vunpack.c.l.b16 %v245
        %v390 = vunpack.c.l.b16 %v246
        %v391 = vunpack.c.l.b16 %v247
        %v392 = vunpack.c.l.b16 %v248
        %v393 = vunpack.c.l.b16 %v249
        %v394 = vunpack.c.l.b16 %v250
        %v395 = vunpack.c.l.b16 %v251
        %v396 = vunpack.c.l.b16 %v252
        %v397 = vunpack.c.l.b16 %v253
        %v398 = vunpack.c.l.b16 %v254
        %v399 = vunpack.c.l.b16 %v255
        %v400 = vunpack.c.l.b16 %v256
        %v401 = vunpack.c.l.b16 %v257
        %v402 = vunpack.c.l.b16 %v258
        %v403 = vunpack.c.l.b16 %v259
        %v404 = vunpack.c.l.b16 %v260
        %v405 = vunpack.c.l.b16 %v261
        %v406 = vunpack.c.l.b16 %v262
        %v407 = vunpack.c.l.b16 %v263
        %v408 = vunpack.c.l.b16 %v264
        %v409 = vunpack.c.l.b16 %v265
        %v410 = vunpack.c.l.b16 %v266
        %v411 = vpack.c.b16 %v380, %v379
        %v412 = vpack.c.b16 %v382, %v381
        %v413 = vpack.c.b16 %v384, %v383
        %v414 = vpack.c.b16 %v386, %v385
        %v415 = vpack.c.b16 %v388, %v387
        %v416 = vpack.c.b16 %v390, %v389
        %v417 = vpack.c.b16 %v392, %v391
        %v418 = vpack.c.b16 %v394, %v393
        %v419 = vpack.c.b16 %v396, %v395
        %v420 = vpack.c.b16 %v398, %v397
        %v421 = vpack.c.b16 %v400, %v399
        %v422 = vpack.c.b16 %v402, %v401
        %v423 = vpack.c.b16 %v404, %v403
        %v424 = vpack.c.b16 %v406, %v405
        %v425 = vpack.c.b16 %v408, %v407
        %v426 = vpack.c.b16 %v410, %v409
        %443 = vmatprep.subr.bf16.mxu0 0
        %444 = vmatpush1.bf16.msra.mxu0 %v418
        %445 = vmatprep.subr.bf16.mxu0 0
        %446 = vmatpush1.bf16.msra.mxu0 %v417
        %447 = vmatprep.subr.bf16.mxu0 0
        %448 = vmatpush1.bf16.msra.mxu0 %v416
        %449 = vmatprep.subr.bf16.mxu0 0
        %450 = vmatpush1.bf16.msra.mxu0 %v415
        %451 = vmatprep.subr.bf16.mxu0 0
        %452 = vmatpush1.bf16.msra.mxu0 %v414
        %453 = vmatprep.subr.bf16.mxu0 0
        %454 = vmatpush1.bf16.msra.mxu0 %v413
        %455 = vmatprep.subr.bf16.mxu0 0
        %456 = vmatpush1.bf16.msra.mxu0 %v412
        %457 = vmatprep.subr.bf16.mxu0 0
        %458 = vmatpush1.bf16.msra.mxu0 %v411
        %459 = vmatprep.subr.bf16.mxu0 0
        %460 = vmatpush2.bf16.msra.mxu0 %v426
        %461 = vmatprep.subr.bf16.mxu0 0
        %462 = vmatpush2.bf16.msra.mxu0 %v425
        %463 = vmatprep.subr.bf16.mxu0 0
        %464 = vmatpush2.bf16.msra.mxu0 %v424
        %465 = vmatprep.subr.bf16.mxu0 0
        %466 = vmatpush2.bf16.msra.mxu0 %v423
        %467 = vmatprep.subr.bf16.mxu0 0
        %468 = vmatpush2.bf16.msra.mxu0 %v422
        %469 = vmatprep.subr.bf16.mxu0 0
        %470 = vmatpush2.bf16.msra.mxu0 %v421
        %471 = vmatprep.subr.bf16.mxu0 0
        %472 = vmatpush2.bf16.msra.mxu0 %v420
        %473 = vmatprep.subr.bf16.mxu0 0
        %474 = vmatpush2.bf16.msra.mxu0 %v419
        %475 = vmatprep.mubr.bf16.mxu0 %v316
        %476 = vmatmul.mubr.bf16.gmra.mxu0 %v315
        %v477 = vpop.f32.mrf.mxu0
        %v478 = vadd.f32 0.0, %v477
        %v479 = vpop.f32.mrf.mxu0
        %v480 = vpop.f32.mrf.mxu0
        %v481 = vadd.f32 0.0, %v480
        %v482 = vpop.f32.mrf.mxu0
        %483 = vmatprep.mubr.bf16.mxu0 %v318
        %484 = vmatmul.mubr.bf16.gmra.mxu0 %v317
        %v485 = vpop.f32.mrf.mxu0
        %v486 = vadd.f32 0.0, %v485
        %v487 = vpop.f32.mrf.mxu0
        %v488 = vpop.f32.mrf.mxu0
        %v489 = vadd.f32 0.0, %v488
        %v490 = vpop.f32.mrf.mxu0
        %491 = vmatprep.mubr.bf16.mxu0 %v320
        %492 = vmatmul.mubr.bf16.gmra.mxu0 %v319
        %v493 = vpop.f32.mrf.mxu0
        %v494 = vadd.f32 0.0, %v493
        %v495 = vpop.f32.mrf.mxu0
        %v496 = vpop.f32.mrf.mxu0
        %v497 = vadd.f32 0.0, %v496
        %v498 = vpop.f32.mrf.mxu0
        %499 = vmatprep.mubr.bf16.mxu0 %v322
        %500 = vmatmul.mubr.bf16.gmra.mxu0 %v321
        %v501 = vpop.f32.mrf.mxu0
        %v502 = vadd.f32 0.0, %v501
        %v503 = vpop.f32.mrf.mxu0
        %v504 = vpop.f32.mrf.mxu0
        %v505 = vadd.f32 0.0, %v504
        %v506 = vpop.f32.mrf.mxu0
        %507 = vmatprep.mubr.bf16.mxu0 %v324
        %508 = vmatmul.mubr.bf16.gmra.mxu0 %v323
        %v509 = vpop.f32.mrf.mxu0
        %v510 = vadd.f32 0.0, %v509
        %v511 = vpop.f32.mrf.mxu0
        %v512 = vpop.f32.mrf.mxu0
        %v513 = vadd.f32 0.0, %v512
        %v514 = vpop.f32.mrf.mxu0
        %515 = vmatprep.mubr.bf16.mxu0 %v326
        %516 = vmatmul.mubr.bf16.gmra.mxu0 %v325
        %v517 = vpop.f32.mrf.mxu0
        %v518 = vadd.f32 0.0, %v517
        %v519 = vpop.f32.mrf.mxu0
        %v520 = vpop.f32.mrf.mxu0
        %v521 = vadd.f32 0.0, %v520
        %v522 = vpop.f32.mrf.mxu0
        %523 = vmatprep.mubr.bf16.mxu0 %v328
        %524 = vmatmul.mubr.bf16.gmra.mxu0 %v327
        %v525 = vpop.f32.mrf.mxu0
        %v526 = vadd.f32 0.0, %v525
        %v527 = vpop.f32.mrf.mxu0
        %v528 = vpop.f32.mrf.mxu0
        %v529 = vadd.f32 0.0, %v528
        %v530 = vpop.f32.mrf.mxu0
        %531 = vmatprep.mubr.bf16.mxu0 %v330
        %532 = vmatmul.mubr.bf16.gmra.mxu0 %v329
        %v533 = vpop.f32.mrf.mxu0
        %v534 = vadd.f32 0.0, %v533
        %v535 = vpop.f32.mrf.mxu0
        %v536 = vpop.f32.mrf.mxu0
        %v537 = vadd.f32 0.0, %v536
        %v538 = vpop.f32.mrf.mxu0
        %539 = vdwg.mxu0
        %540 = vst [vmem:[%s213] sm:$0xff] %v478
        %541 = vst [vmem:[%s213 + $0x8] sm:$0xff] %v481
        %542 = vst [vmem:[%s213 + $0x10] sm:$0xff] %v486
        %543 = vst [vmem:[%s213 + $0x18] sm:$0xff] %v489
        %544 = vst [vmem:[%s213 + $0x20] sm:$0xff] %v494
        %545 = vst [vmem:[%s213 + $0x28] sm:$0xff] %v497
        %546 = vst [vmem:[%s213 + $0x30] sm:$0xff] %v502
        %547 = vst [vmem:[%s213 + $0x38] sm:$0xff] %v505
        %548 = vst [vmem:[%s213 + $0x40] sm:$0xff] %v510
        %549 = vst [vmem:[%s213 + $0x48] sm:$0xff] %v513
        %550 = vst [vmem:[%s213 + $0x50] sm:$0xff] %v518
        %551 = vst [vmem:[%s213 + $0x58] sm:$0xff] %v521
        %552 = vst [vmem:[%s213 + $0x60] sm:$0xff] %v526
        %553 = vst [vmem:[%s213 + $0x68] sm:$0xff] %v529
        %554 = vst [vmem:[%s213 + $0x70] sm:$0xff] %v534
        %555 = vst [vmem:[%s213 + $0x78] sm:$0xff] %v537
        %s556 = sand.u32 %s105, 1
        %s557 = scalar_lea.sflag [#allocation4], %s556
        %s558 = sand.u32 %s105, 1
        %s559 = smul.addr %s558, 128
        %s560 = scalar_lea.vmem [#allocation7], %s559
        // Predicated region
        $region37: #{_dense_matmul.1} parent=27 // pred_check
          %p561 = pneg %p115
        $region38: #{_dense_matmul.1} parent=27 // pred_check_branch
          %563 = sbr.rel (%p561) target = $region40
        $region39: #{_dense_matmul.1} parent=27 // pred_region
          %s564 = smul.u32 16, %s25
          %s566 = ssub.s32 2048, 2048
          %567 = vsyncadd %s557, %s566
          %s568 = sadd.s32 %s26, %s564
          %s569 = smul.addr %s568, 128
          %s570 = scalar_lea.hbm %s2, %s569
          %s571 = sshll.u32 %s560, 4
          %s572 = int_to_ptr.vmem [resolvable:$true] %s571
          %577 = dma.vmem_to_hbm [thread:$0]  %s572, 2048, %s570, %s557, 128, 128, 8
        $region40: #{_dense_matmul.1} parent=27 // pred_fallthru
          _
      $region28: #{_dense_matmul.1} parent=5 // pred_fallthru
        _
      %p578 = scmp.le.s32.totalorder 2, %s15
      // Predicated region
      $region41: #{_dense_matmul.1} parent=5 // pred_check
        %p579 = pneg %p578
      $region42: #{_dense_matmul.1} parent=5 // pred_check_branch
        %581 = sbr.rel (%p579) target = $region44
      $region43: #{_dense_matmul.1} parent=5 // pred_region
        %s582 = ssub.s32 %s15, 2
        // Predicated region
        $region45: #{_dense_matmul.1} parent=43 // pred_check
          %p583 = pneg %p121
        $region46: #{_dense_matmul.1} parent=43 // pred_check_branch
          %585 = sbr.rel (%p583) target = $region48
        $region47: #{_dense_matmul.1} parent=43 // pred_region
          %s586 = sand.u32 %s106, 1
          %s587 = scalar_lea.sflag [#allocation4], %s586
          %s588 = sand.u32 %s106, 1
          %s589 = smul.addr %s588, 128
          %s590 = scalar_lea.vmem [#allocation7], %s589
          %591 = dma.done %s587, 2048
        $region48: #{_dense_matmul.1} parent=43 // pred_fallthru
          _
      $region44: #{_dense_matmul.1} parent=5 // pred_fallthru
        _
    $region6: #{_dense_matmul.1} parent=1 // loop_footer
      %s19 = sadd.s32 1, %s15
    $region7: #{_dense_matmul.1} parent=1 // loop_footer_branch
      %14 = sbr.rel target = $region3
    $region8: #{_dense_matmul.1} parent=1 // loop_exit
      _
    %592 = vsyncpa [#allocation3], 1
    %s593 = scalar_lea.sflag [#allocation3], 1
    %594 = vsyncpa %s593, 1
    %595 = vsyncpa [#allocation6], 1
    %596 = vsyncpa [#allocation4], 1
    %s597 = scalar_lea.sflag [#allocation4], 1
    %598 = vsyncpa %s597, 1

</llo_original>
